<compile_context>
chip_gen: v5e
topology: v5e:2x2
jax: 0.10.0
libtpu: 0.0.40
codegen_flags: <defaults>
</compile_context>

<pallas_src>
import functools

import jax
import jax.numpy as jnp
from jax.experimental import pallas as pl
from jax.experimental.pallas import tpu as pltpu

LANE = 128
SUBLANE = 8
MAX_TILE_ROWS = 4096  # (4096, 128) f32 tile = 2 MiB per stream per buffer


def _round_up(a, b):
    return (a + b - 1) // b * b


def _cdiv(a, b):
    return -(-a // b)


def _sublane_granule(dtype):
    """Native sublane packing: 8 rows (4B dtypes), 16 (2B), 32 (1B)."""
    return max(SUBLANE, 32 // jnp.dtype(dtype).itemsize)


def _vmem_limit_bytes(per_tile_stream_bytes):
    """Double-buffered footprint of all streams + ~2 MiB margin (tight, v7x-safe)."""
    need = 2 * sum(per_tile_stream_bytes) + (2 << 20)
    return int(min(max(need, 4 << 20), 32 << 20))


def _as_slab(a, slab_rows):
    """Flatten to [slab_rows, 128] in the native dtype; zero-pad only if needed."""
    flat = a.reshape(-1)
    pad = slab_rows * LANE - flat.size
    if pad:
        flat = jnp.pad(flat, (0, pad))
    return flat.reshape(slab_rows, LANE)


# ---------------------------------------------------------------------------
# Kernels
# ---------------------------------------------------------------------------
def _mse_reduce_kernel(x_ref, y_ref, o_ref, *, steps, steps_per_part, tile_rows,
                       valid_rows, mask_tail):
    """Accumulate sum((x - y)^2) into a resident (8,128) f32 output block.

    Grid = (parts, steps_per_part): axis 0 'parallel' (one partial block per
    part / TensorCore), axis 1 'arbitrary' (reduction).  The ragged tail tile
    is masked with an iota row mask; padded iterations (when parts *
    steps_per_part > steps) are skipped via pl.when and a clamped index_map.
    """
    p = pl.program_id(0)
    i = pl.program_id(1)
    g = p * steps_per_part + i  # global step index

    @pl.when(i == 0)
    def _():
        o_ref[...] = jnp.zeros_like(o_ref)

    def tile_sum(masked):
        d = x_ref[...].astype(jnp.float32) - y_ref[...].astype(jnp.float32)
        dd = d * d
        if masked:
            row = jax.lax.broadcasted_iota(jnp.int32, dd.shape, 0) + g * tile_rows
            dd = jnp.where(row < valid_rows, dd, 0.0)
        # Fold (tile_rows, 128) down to one (8,128) vreg with plain vector adds.
        return jnp.sum(dd.reshape(-1, SUBLANE, LANE), axis=0)

    if mask_tail:
        @pl.when(g == steps - 1)
        def _():
            o_ref[...] += tile_sum(True)

        @pl.when(g < steps - 1)
        def _():
            o_ref[...] += tile_sum(False)
    else:
        @pl.when(g < steps)
        def _():
            o_ref[...] += tile_sum(False)


def _mse_none_kernel(x_ref, y_ref, o_ref, *, weight):
    """Elementwise weight * (x - y)^2; ragged tail writes are clipped by Pallas."""
    d = x_ref[...].astype(jnp.float32) - y_ref[...].astype(jnp.float32)
    o_ref[...] = (weight * (d * d)).astype(o_ref.dtype)


# ---------------------------------------------------------------------------
# Public entry point
# ---------------------------------------------------------------------------
def l2_loss(x, y, *, weight=1.0, reduction="mean", max_tile_rows=MAX_TILE_ROWS):
    if x.shape != y.shape:
        raise RuntimeError(f"Shape mismatch: x={x.shape}, y={y.shape}")
    if isinstance(weight, (int, float)) and weight < 0:
        raise ValueError(f"weight must be non-negative, got {weight}")
    if reduction not in ("none", "mean", "sum"):
        raise ValueError(f"Invalid reduction mode: {reduction}")

    n_elems = x.size
    rows = _cdiv(n_elems, LANE)
    granule = max(_sublane_granule(x.dtype), _sublane_granule(y.dtype))
    slab_rows = _round_up(rows, granule)            # tiny pad only (<= granule rows)
    tile_rows = min(_round_up(max_tile_rows, granule), slab_rows)
    steps = _cdiv(slab_rows, tile_rows)
    mask_tail = (slab_rows % tile_rows) != 0        # ragged last block

    x2 = _as_slab(x, slab_rows)
    y2 = _as_slab(y, slab_rows)
    tile_elems = tile_rows * LANE
    out_dtype = jnp.result_type(x.dtype, y.dtype)

    if reduction == "none":
        vmem_limit = _vmem_limit_bytes([
            tile_elems * x2.dtype.itemsize,
            tile_elems * y2.dtype.itemsize,
            tile_elems * jnp.dtype(out_dtype).itemsize,
        ])
        out2 = pl.pallas_call(
            functools.partial(_mse_none_kernel, weight=float(weight)),
            out_shape=jax.ShapeDtypeStruct((slab_rows, LANE), out_dtype),
            grid_spec=pltpu.PrefetchScalarGridSpec(
                num_scalar_prefetch=0,
                grid=(steps,),
                in_specs=[
                    pl.BlockSpec((tile_rows, LANE), lambda i: (i, 0)),
                    pl.BlockSpec((tile_rows, LANE), lambda i: (i, 0)),
                ],
                out_specs=pl.BlockSpec((tile_rows, LANE), lambda i: (i, 0)),
            ),
            compiler_params=pltpu.CompilerParams(
                dimension_semantics=("parallel",),
                vmem_limit_bytes=vmem_limit,
            ),
        )(x2, y2)
        if slab_rows * LANE == n_elems:
            return out2.reshape(x.shape)
        # Unavoidable only when n_elems is not a multiple of 128 lanes.
        return out2.reshape(-1)[:n_elems].reshape(x.shape)

    # --- 'mean' / 'sum' reduction path ------------------------------------
    scale = float(weight) / n_elems if reduction == "mean" else float(weight)

    # Unconditional 2-way partial split whenever there are >= 2 steps, so both
    # v7x TensorCores stream HBM even for odd step counts (padded iterations
    # are guarded in-kernel; index_map is clamped).  No-op cost on v5e/v6e.
    parts = 2 if steps >= 2 else 1
    steps_per_part = _cdiv(steps, parts)
    last = steps - 1

    def in_map(p, i, _spp=steps_per_part, _last=last):
        return (jnp.minimum(p * _spp + i, _last), 0)

    vmem_limit = _vmem_limit_bytes(
        [tile_elems * x2.dtype.itemsize, tile_elems * y2.dtype.itemsize]
    )

    partials = pl.pallas_call(
        functools.partial(
            _mse_reduce_kernel,
            steps=steps,
            steps_per_part=steps_per_part,
            tile_rows=tile_rows,
            valid_rows=slab_rows,
            mask_tail=mask_tail,
        ),
        out_shape=jax.ShapeDtypeStruct((parts * SUBLANE, LANE), jnp.float32),
        grid_spec=pltpu.PrefetchScalarGridSpec(
            num_scalar_prefetch=0,
            grid=(parts, steps_per_part),
            in_specs=[
                pl.BlockSpec((tile_rows, LANE), in_map),
                pl.BlockSpec((tile_rows, LANE), in_map),
            ],
            # Output block index constant across the reduction axis -> resident
            # (8,128) partial-sum block per part.
            out_specs=pl.BlockSpec((SUBLANE, LANE), lambda p, i: (p, 0)),
        ),
        compiler_params=pltpu.CompilerParams(
            dimension_semantics=("parallel", "arbitrary"),
            vmem_limit_bytes=vmem_limit,
        ),
    )(x2, y2)

    # Tiny cross-lane reduce of the (<= 2) per-core partial vregs + scaling.
    return (jnp.sum(partials) * scale).astype(out_dtype)


# ---------------------------------------------------------------------------
# Demo / self-check
# ---------------------------------------------------------------------------
if __name__ == "__main__":
    key = jax.random.PRNGKey(0)
    kx, ky = jax.random.split(key)

    # NCHW example shapes, consistent with a typical estimate/reference pair.
    x = jax.random.normal(kx, (2, 4, 16, 16), dtype=jnp.float32)
    y = jax.random.normal(ky, (2, 4, 16, 16), dtype=jnp.float32)
    weight = 1.0  # DEFAULT_WEIGHT

    loss_mean = jax.block_until_ready(l2_loss(x, y, weight=weight, reduction="mean"))
    loss_sum = jax.block_until_ready(l2_loss(x, y, weight=weight, reduction="sum"))
    loss_none = jax.block_until_ready(l2_loss(x, y, weight=weight, reduction="none"))

    ref_mean = weight * jnp.mean((x - y) ** 2)
    ref_sum = weight * jnp.sum((x - y) ** 2)
    ref_none = weight * (x - y) ** 2
    assert jnp.allclose(loss_mean, ref_mean, rtol=1e-5, atol=1e-6)
    assert jnp.allclose(loss_sum, ref_sum, rtol=1e-4, atol=1e-3)
    assert loss_none.shape == x.shape
    assert jnp.allclose(loss_none, ref_none, rtol=1e-5, atol=1e-6)

    # Odd-sized input: exercises the lane/granule padding path (both reductions).
    xo = jax.random.normal(kx, (3, 5, 7), dtype=jnp.float32)
    yo = jax.random.normal(ky, (3, 5, 7), dtype=jnp.float32)
    loss_odd = jax.block_until_ready(l2_loss(xo, yo, weight=0.5, reduction="mean"))
    assert jnp.allclose(loss_odd, 0.5 * jnp.mean((xo - yo) ** 2), rtol=1e-5, atol=1e-6)
    loss_odd_none = jax.block_until_ready(l2_loss(xo, yo, weight=0.5, reduction="none"))
    assert loss_odd_none.shape == xo.shape
    assert jnp.allclose(loss_odd_none, 0.5 * (xo - yo) ** 2, rtol=1e-5, atol=1e-6)

    # Multi-step reduce with small tile override: exercises the 2-way partials
    # split, the clamped/guarded padded iteration, and the ragged-tail mask.
    xm = jax.random.normal(kx, (37, 128), dtype=jnp.float32)
    ym = jax.random.normal(ky, (37, 128), dtype=jnp.float32)
    loss_m = jax.block_until_ready(l2_loss(xm, ym, reduction="sum", max_tile_rows=16))
    assert jnp.allclose(loss_m, jnp.sum((xm - ym) ** 2), rtol=1e-4, atol=1e-3)

    # bf16 inputs: native-dtype streaming + in-kernel f32 math; 'none' keeps bf16.
    xb = x.astype(jnp.bfloat16)
    yb = y.astype(jnp.bfloat16)
    loss_b_mean = jax.block_until_ready(l2_loss(xb, yb, reduction="mean"))
    loss_b_none = jax.block_until_ready(l2_loss(xb, yb, reduction="none"))
    ref_b_mean = jnp.mean((xb.astype(jnp.float32) - yb.astype(jnp.float32)) ** 2)
    assert jnp.allclose(loss_b_mean.astype(jnp.float32), ref_b_mean, rtol=2e-2, atol=2e-2)
    assert loss_b_none.dtype == jnp.bfloat16 and loss_b_none.shape == xb.shape

    print("KERNEL_OK")
</pallas_src>

<mosaic_0001>
module attributes {stable_mosaic.version = 11 : i64} {
  func.func @_mse_reduce_kernel(%arg0: i32, %arg1: i32, %arg2: memref<16x128xf32, #tpu.memory_space<vmem>>, %arg3: memref<16x128xf32, #tpu.memory_space<vmem>>, %arg4: memref<8x128xf32, #tpu.memory_space<vmem>>) attributes {dimension_semantics = [#tpu.dimension_semantics<parallel>, #tpu.dimension_semantics<arbitrary>], iteration_bounds = array<i64: 1, 1>, scalar_prefetch = 0 : i64, scratch_operands = 0 : i64, tpu.core_type = #tpu.core_type<tc>, window_params = [{transform_indices = @transform_0, window_bounds = array<i64: 16, 128>}, {transform_indices = @transform_1, window_bounds = array<i64: 16, 128>}, {transform_indices = @transform_2, window_bounds = array<i64: 8, 128>}]} {
    %c1_i32 = arith.constant 1 : i32
    %0 = arith.muli %arg0, %c1_i32 : i32
    %1 = arith.addi %0, %arg1 : i32
    %c0_i32 = arith.constant 0 : i32
    %2 = arith.cmpi eq, %arg1, %c0_i32 : i32
    %3 = arith.extui %2 : i1 to i32
    %c0_i32_0 = arith.constant 0 : i32
    %4 = arith.cmpi ne, %3, %c0_i32_0 : i32
    scf.if %4 {
      %cst = arith.constant 0.000000e+00 : f32
      %8 = vector.broadcast %cst : f32 to vector<8x128xf32>
      %c0 = arith.constant 0 : index
      %c0_3 = arith.constant 0 : index
      %9 = vector.load %arg4[%c0, %c0_3] : memref<8x128xf32, #tpu.memory_space<vmem>>, vector<8x128xf32>
      tpu.vector_store %arg4[%c0, %c0_3], %8 {strides = array<i32>} : memref<8x128xf32, #tpu.memory_space<vmem>>, vector<8x128xf32>,
    } else {
    }
    %c1_i32_1 = arith.constant 1 : i32
    %5 = arith.cmpi slt, %1, %c1_i32_1 : i32
    %6 = arith.extui %5 : i1 to i32
    %c0_i32_2 = arith.constant 0 : i32
    %7 = arith.cmpi ne, %6, %c0_i32_2 : i32
    scf.if %7 {
      %c0 = arith.constant 0 : index
      %c0_3 = arith.constant 0 : index
      %8 = vector.load %arg4[%c0, %c0_3] : memref<8x128xf32, #tpu.memory_space<vmem>>, vector<8x128xf32>
      %c0_4 = arith.constant 0 : index
      %c0_5 = arith.constant 0 : index
      %9 = vector.load %arg2[%c0_4, %c0_5] : memref<16x128xf32, #tpu.memory_space<vmem>>, vector<16x128xf32>
      %c0_6 = arith.constant 0 : index
      %c0_7 = arith.constant 0 : index
      %10 = vector.load %arg3[%c0_6, %c0_7] : memref<16x128xf32, #tpu.memory_space<vmem>>, vector<16x128xf32>
      %11 = arith.subf %9, %10 : vector<16x128xf32>
      %12 = arith.mulf %11, %11 : vector<16x128xf32>
      %13 = vector.shape_cast %12 : vector<16x128xf32> to vector<2x8x128xf32>
      %cst = arith.constant dense<0.000000e+00> : vector<8x128xf32>
      %14 = vector.multi_reduction <add>, %13, %cst [0] : vector<2x8x128xf32> to vector<8x128xf32>
      %15 = arith.addf %8, %14 : vector<8x128xf32>
      %c0_8 = arith.constant 0 : index
      %c0_9 = arith.constant 0 : index
      %16 = vector.load %arg4[%c0_8, %c0_9] : memref<8x128xf32, #tpu.memory_space<vmem>>, vector<8x128xf32>
      tpu.vector_store %arg4[%c0_8, %c0_9], %15 {strides = array<i32>} : memref<8x128xf32, #tpu.memory_space<vmem>>, vector<8x128xf32>,
    } else {
    }
    return
  }
  func.func @transform_0(%arg0: i32, %arg1: i32) -> (i32, i32) {
    %c1_i32 = arith.constant 1 : i32
    %0 = arith.muli %arg0, %c1_i32 : i32
    %1 = arith.addi %0, %arg1 : i32
    %c0_i32 = arith.constant 0 : i32
    %2 = arith.minsi %1, %c0_i32 : i32
    %c0_i32_0 = arith.constant 0 : i32
    %c0_i32_1 = arith.constant 0 : i32
    return %2, %c0_i32_0 : i32, i32
  }
  func.func @transform_1(%arg0: i32, %arg1: i32) -> (i32, i32) {
    %c1_i32 = arith.constant 1 : i32
    %0 = arith.muli %arg0, %c1_i32 : i32
    %1 = arith.addi %0, %arg1 : i32
    %c0_i32 = arith.constant 0 : i32
    %2 = arith.minsi %1, %c0_i32 : i32
    %c0_i32_0 = arith.constant 0 : i32
    %c0_i32_1 = arith.constant 0 : i32
    return %2, %c0_i32_0 : i32, i32
  }
  func.func @transform_2(%arg0: i32, %arg1: i32) -> (i32, i32) {
    %c0_i32 = arith.constant 0 : i32
    %c0_i32_0 = arith.constant 0 : i32
    return %arg0, %c0_i32 : i32, i32
  }
}

</mosaic_0001>

<llo_original>
// kernel: tpu_custom_call.1
$region0: #{tpu_custom_call.1}
  #allocation0 [shape = 'u32[]', space=smem, size = 0x4, offset = 0x4, fixed_abs, tag = 'smem constant byte address 0x4 - core index']
  #allocation1 [shape = 'u32[72,128]{1,0:T(1,128)}', space=vmem, size = 0x9000, scoped, tag = 'internal scratch']
  %s0 = inlined_call_operand.hbm [shape: f32[16,128], index: 0, kind: input, shape index: {}]
  %s1 = inlined_call_operand.hbm [shape: f32[16,128], index: 1, kind: input, shape index: {}]
  %s2 = inlined_call_operand.hbm [shape: f32[8,128], index: 2, kind: output, shape index: {}]
  %s3 = sld [smem:[#allocation0]]
  $region34: #{tpu_custom_call.1} parent=0
    _
  %s5 = ssub.s32 1, %s3
  %s6 = scalar_select 0, %s5, %s3
  $region1: #{tpu_custom_call.1} parent=0
    #allocation2 [shape = 'u8[8192]{0}', space=vmem, size = 0x2000, scoped, tag = 'input window, operand 0, single buffered']
    #allocation3 [shape = 's32[1]{0}', space=sflag, size = 0x4, scoped, tag = 'scoped memory for tpu_custom_call.1']
    #allocation4 [shape = 's32[1]{0}', space=sflag, size = 0x4, scoped, tag = 'scoped memory for tpu_custom_call.1']
    #allocation5 [shape = 'u8[8192]{0}', space=vmem, size = 0x2000, scoped, tag = 'input window, operand 1, single buffered']
    #allocation6 [shape = 's32[1]{0}', space=sflag, size = 0x4, scoped, tag = 'scoped memory for tpu_custom_call.1']
    #allocation7 [shape = 'u8[4096]{0}', space=vmem, size = 0x1000, scoped, tag = 'output window, operand 0, single buffered']
    %7 = vsyncpa [#allocation3], 0
    %8 = vsyncpa [#allocation6], 0
    %9 = vsyncpa [#allocation4], 0
    // Predicated region
    $region2: #{tpu_custom_call.1} parent=1 // pred_check
      _
    $region3: #{tpu_custom_call.1} parent=1 // pred_check_branch
      %11 = sbr.rel (0) target = $region5
    $region4: #{tpu_custom_call.1} parent=1 // pred_region
      %s12 = sadd.s32 0, 0
      %p13 = scmp.lt.s32.totalorder %s12, 0
      %s14 = scalar_select %p13, %s12, 0
      %s15 = smul.u32 2, %s14
      %17 = vsyncadd [#allocation3], 0
      %s18 = smul.addr %s15, 8
      %s19 = scalar_lea.hbm %s0, %s18
      %s20 = sshll.u32 %s19, 4
      %s21 = int_to_ptr.hbm [resolvable:$true] %s20
      %s22 = sshll.u32 [#allocation2], 4
      %s23 = int_to_ptr.vmem [resolvable:$true] %s22
      %28 = dma.hbm_to_vmem [thread:$0]  %s21, 256, %s23, [#allocation3], 128, 128, 8
    $region5: #{tpu_custom_call.1} parent=1 // pred_fallthru
      _
    // Predicated region
    $region6: #{tpu_custom_call.1} parent=1 // pred_check
      _
    $region7: #{tpu_custom_call.1} parent=1 // pred_check_branch
      %30 = sbr.rel (0) target = $region9
    $region8: #{tpu_custom_call.1} parent=1 // pred_region
      %s31 = sadd.s32 0, 0
      %p32 = scmp.lt.s32.totalorder %s31, 0
      %s33 = scalar_select %p32, %s31, 0
      %s34 = smul.u32 2, %s33
      %36 = vsyncadd [#allocation6], 0
      %s37 = smul.addr %s34, 8
      %s38 = scalar_lea.hbm %s1, %s37
      %s39 = sshll.u32 %s38, 4
      %s40 = int_to_ptr.hbm [resolvable:$true] %s39
      %s41 = sshll.u32 [#allocation5], 4
      %s42 = int_to_ptr.vmem [resolvable:$true] %s41
      %47 = dma.hbm_to_vmem [thread:$0]  %s40, 256, %s42, [#allocation6], 128, 128, 8
    $region9: #{tpu_custom_call.1} parent=1 // pred_fallthru
      _
    // Predicated region
    $region10: #{tpu_custom_call.1} parent=1 // pred_check
      _
    $region11: #{tpu_custom_call.1} parent=1 // pred_check_branch
      %49 = sbr.rel (0) target = $region13
    $region12: #{tpu_custom_call.1} parent=1 // pred_region
      %51 = dma.done [#allocation3], 256
    $region13: #{tpu_custom_call.1} parent=1 // pred_fallthru
      _
    // Predicated region
    $region14: #{tpu_custom_call.1} parent=1 // pred_check
      _
    $region15: #{tpu_custom_call.1} parent=1 // pred_check_branch
      %53 = sbr.rel (0) target = $region17
    $region16: #{tpu_custom_call.1} parent=1 // pred_region
      %55 = dma.done [#allocation6], 256
    $region17: #{tpu_custom_call.1} parent=1 // pred_fallthru
      _
    %s56 = sadd.s32 0, 0
    %p57 = scmp.lt.s32.totalorder %s56, 0
    %s58 = scalar_select %p57, %s56, 0
    %s59 = smul.u32 2, %s58
    %s60 = sadd.s32 0, 0
    %p61 = scmp.lt.s32.totalorder %s60, 0
    %s62 = scalar_select %p61, %s60, 0
    %s63 = smul.u32 2, %s62
    %s64 = sadd.s32 0, 0
    %p65 = scmp.eq.s32.totalorder 0, 0
    // Predicated region
    $region18: #{tpu_custom_call.1} parent=1 // pred_check
      %p66 = pneg %p65
    $region19: #{tpu_custom_call.1} parent=1 // pred_check_branch
      %68 = sbr.rel (%p66) target = $region21
    $region20: #{tpu_custom_call.1} parent=1 // pred_region
      %69 = vst [vmem:[#allocation7] sm:$0xff] 0.0
    $region21: #{tpu_custom_call.1} parent=1 // pred_fallthru
      _
    %p70 = scmp.lt.s32.totalorder %s64, 1
    // Predicated region
    $region22: #{tpu_custom_call.1} parent=1 // pred_check
      %p71 = pneg %p70
    $region23: #{tpu_custom_call.1} parent=1 // pred_check_branch
      %73 = sbr.rel (%p71) target = $region25
    $region24: #{tpu_custom_call.1} parent=1 // pred_region
      %v74 = vld [vmem:[#allocation7] sm:$0xff]
      %v75 = vld [vmem:[#allocation2] sm:$0xff]
      %v76 = vld [vmem:[#allocation2 + $0x8] sm:$0xff]
      %v77 = vld [vmem:[#allocation5] sm:$0xff]
      %v78 = vld [vmem:[#allocation5 + $0x8] sm:$0xff]
      %v79 = vsub.f32 %v75, %v77
      %v80 = vsub.f32 %v76, %v78
      %v81 = vmul.f32 %v79, %v79
      %v82 = vmul.f32 %v80, %v80
      %v83 = vadd.f32 %v81, %v82
      %v84 = vadd.f32 %v74, %v83
      %85 = vst [vmem:[#allocation7] sm:$0xff] %v84
    $region25: #{tpu_custom_call.1} parent=1 // pred_fallthru
      _
    // Predicated region
    $region26: #{tpu_custom_call.1} parent=1 // pred_check
      _
    $region27: #{tpu_custom_call.1} parent=1 // pred_check_branch
      %87 = sbr.rel (0) target = $region29
    $region28: #{tpu_custom_call.1} parent=1 // pred_region
      %89 = vsyncadd [#allocation4], 0
      %s91 = sshll.u32 [#allocation7], 4
      %s92 = int_to_ptr.vmem [resolvable:$true] %s91
      %s93 = sshll.u32 %s2, 4
      %s94 = int_to_ptr.hbm [resolvable:$true] %s93
      %96 = dma.vmem_to_hbm [thread:$0]  %s92, 128, %s94, [#allocation4]
    $region29: #{tpu_custom_call.1} parent=1 // pred_fallthru
      _
    // Predicated region
    $region30: #{tpu_custom_call.1} parent=1 // pred_check
      _
    $region31: #{tpu_custom_call.1} parent=1 // pred_check_branch
      %98 = sbr.rel (0) target = $region33
    $region32: #{tpu_custom_call.1} parent=1 // pred_region
      %100 = dma.done [#allocation4], 128
    $region33: #{tpu_custom_call.1} parent=1 // pred_fallthru
      _
    %101 = vsyncpa [#allocation3], 1
    %102 = vsyncpa [#allocation6], 1
    %103 = vsyncpa [#allocation4], 1

</llo_original>
